<compile_context>
chip_gen: v7x
topology: tpu7x:2x2x1
jax: 0.10.0
libtpu: 0.0.40
codegen_flags: <defaults>
</compile_context>

<pallas_src>
import functools

import jax
import jax.numpy as jnp
import numpy as np
from jax.experimental import pallas as pl
from jax.experimental.pallas import tpu as pltpu


# ----------------------------- Pallas kernel ------------------------------- #

def _se_kernel(x_ref, p_ref, o_ref, *, C, Cr, inv_hw):
    """TN samples per grid step: out = x * sigmoid(excite(relu(fc(mean_hw(x))))).

    Shapes (all f32, channels on sublanes, spatial on lanes):
      x_ref : (TN, C, HW)
      p_ref : (C+1, 2*Cr+1) packed params:
                rows 0..C-1 : [ W_fc^T (C,Cr) | W_ex (C,Cr) | b_ex (C,) ]
                row  C      : [ b_fc  (Cr,)   |        zeros            ]
      o_ref : (TN, C, HW)
    """
    x = x_ref[...]                                            # (TN, C, HW)
    p = p_ref[...]                                            # (C+1, 2Cr+1)
    w1 = p[0:C, 0:Cr]                                         # (C, Cr)
    w2 = p[0:C, Cr:2 * Cr]                                    # (C, Cr)
    b2 = p[0:C, 2 * Cr:2 * Cr + 1]                            # (C, 1)
    b1 = p[C:C + 1, 0:Cr]                                     # (1, Cr)

    # squeeze: per-channel global mean over the lane (spatial) axis.
    # NOTE: inv_hw is the *global* 1/(H*W); the spatial axis is never tiled.
    se = jnp.sum(x, axis=-1, keepdims=True) * inv_hw          # (TN, C, 1)

    # fc + ReLU (exact f32 via broadcast-multiply + small reductions).
    h = jnp.sum(se * w1, axis=1, keepdims=True) + b1          # (TN, 1, Cr)
    h = jnp.maximum(h, 0.0)

    # excite + sigmoid
    z = jnp.sum(h * w2, axis=2, keepdims=True) + b2           # (TN, C, 1)
    s = pl.reciprocal(1.0 + jnp.exp(-z), approx=False)        # sigmoid(z)

    # scale: broadcast per-channel gate over the spatial (lane) axis.
    o_ref[...] = x * s                                        # (TN, C, HW)


# ------------------------------ block forward ------------------------------ #

def se_block(x_nchw, W_fc, b_fc, W_ex, b_ex, *, max_tile_bytes=2 * 1024 * 1024):
    """SEblock forward.  x_nchw: (N, C, H, W); PyTorch-layout weights:
       W_fc: (C//ratio, C), b_fc: (C//ratio,), W_ex: (C, C//ratio), b_ex: (C,)."""
    N, C, H, W = x_nchw.shape
    Cr = W_fc.shape[0]
    HW = H * W

    x3d = x_nchw.reshape(N, C, HW).astype(jnp.float32)   # free view (channel-major)

    # Samples per grid step: big enough to amortize per-step overhead, small
    # enough that 2x(in)+2x(out) double-buffered tiles fit every chip's VMEM.
    bytes_per_sample = C * HW * 4
    TN = int(max(1, min(N, max_tile_bytes // bytes_per_sample)))
    grid = (pl.cdiv(N, TN),)

    # Pack all four tiny parameter tensors into one resident VMEM array.
    packed = jnp.zeros((C + 1, 2 * Cr + 1), jnp.float32)
    packed = packed.at[:C, 0:Cr].set(W_fc.T.astype(jnp.float32))
    packed = packed.at[:C, Cr:2 * Cr].set(W_ex.astype(jnp.float32))
    packed = packed.at[:C, 2 * Cr].set(b_ex.astype(jnp.float32))
    packed = packed.at[C, 0:Cr].set(b_fc.astype(jnp.float32))

    kernel = functools.partial(_se_kernel, C=C, Cr=Cr, inv_hw=1.0 / HW)

    out = pl.pallas_call(
        kernel,
        out_shape=jax.ShapeDtypeStruct((N, C, HW), jnp.float32),
        grid=grid,
        in_specs=[
            pl.BlockSpec((TN, C, HW), lambda t: (t, 0, 0)),       # sample tile
            pl.BlockSpec((C + 1, 2 * Cr + 1), lambda t: (0, 0)),  # resident params
        ],
        out_specs=pl.BlockSpec((TN, C, HW), lambda t: (t, 0, 0)),
        compiler_params=pltpu.CompilerParams(
            dimension_semantics=("parallel",),     # shards sample tiles across v7x TCs
            vmem_limit_bytes=32 * 1024 * 1024,     # raise v5e's 16 MiB scoped default
        ),
    )(x3d, packed)

    return out.reshape(N, C, H, W)


# ------------------------ pure-JAX reference (NCHW) ------------------------ #

def reference(x, W_fc, b_fc, W_ex, b_ex):
    se = x.mean(axis=(2, 3))                                              # (N, C)
    h = jax.nn.relu(jnp.dot(se, W_fc.T,
                            precision=jax.lax.Precision.HIGHEST) + b_fc)  # (N, Cr)
    s = jax.nn.sigmoid(jnp.dot(h, W_ex.T,
                               precision=jax.lax.Precision.HIGHEST) + b_ex)  # (N, C)
    return x * s[:, :, None, None]


# ----------------------------------- main ----------------------------------- #

if __name__ == "__main__":
    key = jax.random.PRNGKey(0)
    kx, k1, k2, k3, k4 = jax.random.split(key, 5)

    N, C, H, W, ratio = 2, 16, 16, 16, 4      # x is NCHW like the PyTorch module
    Cr = C // ratio

    x = jax.random.normal(kx, (N, C, H, W), jnp.float32)
    W_fc = jax.random.normal(k1, (Cr, C), jnp.float32) * 0.1   # nn.Linear(C, C//ratio)
    b_fc = jax.random.normal(k2, (Cr,), jnp.float32) * 0.1
    W_ex = jax.random.normal(k3, (C, Cr), jnp.float32) * 0.1   # nn.Linear(C//ratio, C)
    b_ex = jax.random.normal(k4, (C,), jnp.float32) * 0.1

    y = se_block(x, W_fc, b_fc, W_ex, b_ex)
    y = jax.block_until_ready(y)

    y_ref = reference(x, W_fc, b_fc, W_ex, b_ex)
    np.testing.assert_allclose(np.asarray(y), np.asarray(y_ref),
                               atol=1e-5, rtol=1e-5)

    print("KERNEL_OK")
</pallas_src>

<mosaic_0001>
module attributes {stable_mosaic.version = 11 : i64} {
  func.func @_se_kernel(%arg0: i32, %arg1: memref<2x16x256xf32, #tpu.memory_space<vmem>>, %arg2: memref<17x9xf32, #tpu.memory_space<vmem>>, %arg3: memref<2x16x256xf32, #tpu.memory_space<vmem>>) attributes {dimension_semantics = [#tpu.dimension_semantics<parallel>], iteration_bounds = array<i64: 1>, scalar_prefetch = 0 : i64, scratch_operands = 0 : i64, tpu.core_type = #tpu.core_type<tc>, window_params = [{transform_indices = @transform_0, window_bounds = array<i64: 2, 16, 256>}, {pipeline_mode = #tpu.pipeline_mode<synchronous>, transform_indices = @transform_1, window_bounds = array<i64: 17, 9>}, {transform_indices = @transform_2, window_bounds = array<i64: 2, 16, 256>}]} {
    %c0 = arith.constant 0 : index
    %c0_0 = arith.constant 0 : index
    %c0_1 = arith.constant 0 : index
    %0 = vector.load %arg1[%c0, %c0_0, %c0_1] : memref<2x16x256xf32, #tpu.memory_space<vmem>>, vector<2x16x256xf32>
    %c0_2 = arith.constant 0 : index
    %c0_3 = arith.constant 0 : index
    %1 = vector.load %arg2[%c0_2, %c0_3] : memref<17x9xf32, #tpu.memory_space<vmem>>, vector<17x9xf32>
    %2 = vector.extract_strided_slice %1 {offsets = [0, 0], sizes = [16, 4], strides = [1, 1]} : vector<17x9xf32> to vector<16x4xf32>
    %3 = vector.extract_strided_slice %1 {offsets = [0, 4], sizes = [16, 4], strides = [1, 1]} : vector<17x9xf32> to vector<16x4xf32>
    %4 = vector.extract_strided_slice %1 {offsets = [0, 8], sizes = [16, 1], strides = [1, 1]} : vector<17x9xf32> to vector<16x1xf32>
    %5 = vector.extract_strided_slice %1 {offsets = [16, 0], sizes = [1, 4], strides = [1, 1]} : vector<17x9xf32> to vector<1x4xf32>
    %cst = arith.constant dense<0.000000e+00> : vector<2x16xf32>
    %6 = vector.multi_reduction <add>, %0, %cst [2] : vector<2x16x256xf32> to vector<2x16xf32>
    %7 = vector.shape_cast %6 : vector<2x16xf32> to vector<2x16x1xf32>
    %cst_4 = arith.constant 3.906250e-03 : f32
    %8 = vector.broadcast %cst_4 : f32 to vector<2x16x1xf32>
    %9 = arith.mulf %7, %8 : vector<2x16x1xf32>
    %10 = vector.shape_cast %2 : vector<16x4xf32> to vector<1x16x4xf32>
    %11 = vector.broadcast %9 : vector<2x16x1xf32> to vector<2x16x4xf32>
    %12 = vector.broadcast %10 : vector<1x16x4xf32> to vector<2x16x4xf32>
    %13 = arith.mulf %11, %12 : vector<2x16x4xf32>
    %cst_5 = arith.constant dense<0.000000e+00> : vector<2x4xf32>
    %14 = vector.multi_reduction <add>, %13, %cst_5 [1] : vector<2x16x4xf32> to vector<2x4xf32>
    %15 = vector.shape_cast %14 : vector<2x4xf32> to vector<2x1x4xf32>
    %16 = vector.shape_cast %5 : vector<1x4xf32> to vector<1x1x4xf32>
    %17 = vector.broadcast %16 : vector<1x1x4xf32> to vector<2x1x4xf32>
    %18 = arith.addf %15, %17 : vector<2x1x4xf32>
    %cst_6 = arith.constant 0.000000e+00 : f32
    %19 = vector.broadcast %cst_6 : f32 to vector<2x1x4xf32>
    %20 = arith.maximumf %18, %19 : vector<2x1x4xf32>
    %21 = vector.shape_cast %3 : vector<16x4xf32> to vector<1x16x4xf32>
    %22 = vector.broadcast %20 : vector<2x1x4xf32> to vector<2x16x4xf32>
    %23 = vector.broadcast %21 : vector<1x16x4xf32> to vector<2x16x4xf32>
    %24 = arith.mulf %22, %23 : vector<2x16x4xf32>
    %cst_7 = arith.constant dense<0.000000e+00> : vector<2x16xf32>
    %25 = vector.multi_reduction <add>, %24, %cst_7 [2] : vector<2x16x4xf32> to vector<2x16xf32>
    %26 = vector.shape_cast %25 : vector<2x16xf32> to vector<2x16x1xf32>
    %27 = vector.shape_cast %4 : vector<16x1xf32> to vector<1x16x1xf32>
    %28 = vector.broadcast %27 : vector<1x16x1xf32> to vector<2x16x1xf32>
    %29 = arith.addf %26, %28 : vector<2x16x1xf32>
    %cst_8 = arith.constant 0.000000e+00 : f32
    %30 = vector.broadcast %cst_8 : f32 to vector<2x16x1xf32>
    %31 = arith.subf %30, %29 : vector<2x16x1xf32>
    %32 = math.exp %31 : vector<2x16x1xf32>
    %cst_9 = arith.constant 1.000000e+00 : f32
    %33 = vector.broadcast %cst_9 : f32 to vector<2x16x1xf32>
    %34 = arith.addf %33, %32 : vector<2x16x1xf32>
    %35 = tpu.reciprocal %34 : vector<2x16x1xf32> -> vector<2x16x1xf32>
    %36 = vector.broadcast %35 : vector<2x16x1xf32> to vector<2x16x256xf32>
    %37 = arith.mulf %0, %36 : vector<2x16x256xf32>
    %c0_10 = arith.constant 0 : index
    %c0_11 = arith.constant 0 : index
    %c0_12 = arith.constant 0 : index
    %38 = vector.load %arg3[%c0_10, %c0_11, %c0_12] : memref<2x16x256xf32, #tpu.memory_space<vmem>>, vector<2x16x256xf32>
    tpu.vector_store %arg3[%c0_10, %c0_11, %c0_12], %37 {strides = array<i32>} : memref<2x16x256xf32, #tpu.memory_space<vmem>>, vector<2x16x256xf32>,
    return
  }
  func.func @transform_0(%arg0: i32) -> (i32, i32, i32) {
    %c0_i32 = arith.constant 0 : i32
    %c0_i32_0 = arith.constant 0 : i32
    %c0_i32_1 = arith.constant 0 : i32
    return %arg0, %c0_i32, %c0_i32_0 : i32, i32, i32
  }
  func.func @transform_1(%arg0: i32) -> (i32, i32) {
    %c0_i32 = arith.constant 0 : i32
    %c0_i32_0 = arith.constant 0 : i32
    %c0_i32_1 = arith.constant 0 : i32
    return %c0_i32, %c0_i32_0 : i32, i32
  }
  func.func @transform_2(%arg0: i32) -> (i32, i32, i32) {
    %c0_i32 = arith.constant 0 : i32
    %c0_i32_0 = arith.constant 0 : i32
    %c0_i32_1 = arith.constant 0 : i32
    return %arg0, %c0_i32, %c0_i32_0 : i32, i32, i32
  }
}

</mosaic_0001>

<llo_original>
// kernel: tpu_custom_call.1
$region0: #{tpu_custom_call.1}
  #allocation0 [shape = 'u32[]', space=smem, size = 0x4, offset = 0x4, fixed_abs, tag = 'smem constant byte address 0x4 - core index']
  #allocation1 [shape = 'u32[144,128]{1,0:T(1,128)}', space=vmem, size = 0x12000, scoped, tag = 'internal scratch']
  %s0 = inlined_call_operand.hbm [shape: f32[2,16,256], index: 0, kind: input, shape index: {}]
  %s1 = inlined_call_operand.vmem [shape: f32[17,9], index: 1, kind: input, shape index: {}]
  %s2 = inlined_call_operand.hbm [shape: f32[2,16,256], index: 2, kind: output, shape index: {}]
  %s3 = sld [smem:[#allocation0]]
  $region22: #{tpu_custom_call.1} parent=0
    _
  %s5 = ssub.s32 1, %s3
  %s6 = scalar_select 0, %s5, %s3
  $region1: #{tpu_custom_call.1} parent=0
    #allocation2 [shape = 'u8[32768]{0}', space=vmem, size = 0x8000, scoped, tag = 'input window, operand 0, single buffered']
    #allocation3 [shape = 's32[1]{0}', space=sflag, size = 0x4, scoped, tag = 'scoped memory for tpu_custom_call.1']
    #allocation4 [shape = 's32[1]{0}', space=sflag, size = 0x4, scoped, tag = 'scoped memory for tpu_custom_call.1']
    #allocation5 [shape = 'u8[32768]{0}', space=vmem, size = 0x8000, scoped, tag = 'output window, operand 0, single buffered']
    %7 = vsyncpa [#allocation3], 0
    %8 = vsyncpa [#allocation4], 0
    // Predicated region
    $region2: #{tpu_custom_call.1} parent=1 // pred_check
      _
    $region3: #{tpu_custom_call.1} parent=1 // pred_check_branch
      %10 = sbr.rel (0) target = $region5
    $region4: #{tpu_custom_call.1} parent=1 // pred_region
      %s12 = ssub.s32 1024, 1024
      %13 = vsyncadd [#allocation3], %s12
      %s14 = sshll.u32 [#allocation2], 4
      %s15 = int_to_ptr.vmem [resolvable:$true] %s14
      %20 = dma.hbm_to_vmem [thread:$0]  %s0, 1024, %s15, [#allocation3], 256, 256, 16
    $region5: #{tpu_custom_call.1} parent=1 // pred_fallthru
      _
    // Predicated region
    $region6: #{tpu_custom_call.1} parent=1 // pred_check
      _
    $region7: #{tpu_custom_call.1} parent=1 // pred_check_branch
      %22 = sbr.rel (0) target = $region9
    $region8: #{tpu_custom_call.1} parent=1 // pred_region
      _
    $region9: #{tpu_custom_call.1} parent=1 // pred_fallthru
      _
    // Predicated region
    $region10: #{tpu_custom_call.1} parent=1 // pred_check
      _
    $region11: #{tpu_custom_call.1} parent=1 // pred_check_branch
      %24 = sbr.rel (0) target = $region13
    $region12: #{tpu_custom_call.1} parent=1 // pred_region
      %25 = dma.done [#allocation3], 1024
    $region13: #{tpu_custom_call.1} parent=1 // pred_fallthru
      _
    %v26 = vld [vmem:[#allocation2] sm:$0xff]
    %v27 = vld [vmem:[#allocation2 + $0x8] sm:$0xff]
    %v28 = vld [vmem:[#allocation2 + $0x10] sm:$0xff]
    %v29 = vld [vmem:[#allocation2 + $0x18] sm:$0xff]
    %v30 = vld [vmem:[#allocation2 + $0x20] sm:$0xff]
    %v31 = vld [vmem:[#allocation2 + $0x28] sm:$0xff]
    %v32 = vld [vmem:[#allocation2 + $0x30] sm:$0xff]
    %v33 = vld [vmem:[#allocation2 + $0x38] sm:$0xff]
    %v34 = vld [vmem:[%s1] sm:$0xff]
    %v35 = vld [vmem:[%s1 + $0x8] sm:$0xff]
    %v36 = vld [vmem:[%s1 + $0x10] sm:$0x1]
    %v37 = vadd.f32 %v26, %v27
    %38 = vadd.xlane.f32.xlu0 %v37
    %v39 = vpop.xlane.xlu0 %38
    %v40 = vadd.f32 %v28, %v29
    %41 = vadd.xlane.f32.xlu0 %v40
    %v42 = vpop.xlane.xlu0 %41
    %v43 = vadd.f32 %v30, %v31
    %44 = vadd.xlane.f32.xlu0 %v43
    %v45 = vpop.xlane.xlu0 %44
    %v46 = vadd.f32 %v32, %v33
    %47 = vadd.xlane.f32.xlu0 %v46
    %v48 = vpop.xlane.xlu0 %47
    %v49 = vmul.f32 %v39, 0.00390625
    %v50 = vmul.f32 %v42, 0.00390625
    %v51 = vmul.f32 %v45, 0.00390625
    %v52 = vmul.f32 %v48, 0.00390625
    %v53 = vmul.f32 %v49, %v34
    %v54 = vmul.f32 %v50, %v35
    %v55 = vmul.f32 %v51, %v34
    %v56 = vmul.f32 %v52, %v35
    %vm57 = vcmask 31744
    %v58 = vsel %vm57, %v53, 0.0
    %v59 = vsel %vm57, %v54, 0.0
    %v60 = vadd.f32 %v58, %v59
    %v61 = vrot.slane %v60, 4
    %v62 = vadd.f32 %v60, %v61
    %v63 = vrot.slane %v62, 2
    %v64 = vadd.f32 %v62, %v63
    %v65 = vrot.slane %v64, 1
    %v66 = vadd.f32 %v64, %v65
    %v67 = vsel %vm57, %v55, 0.0
    %v68 = vsel %vm57, %v56, 0.0
    %v69 = vadd.f32 %v67, %v68
    %v70 = vrot.slane %v69, 4
    %v71 = vadd.f32 %v69, %v70
    %v72 = vrot.slane %v71, 2
    %v73 = vadd.f32 %v71, %v72
    %v74 = vrot.slane %v73, 1
    %v75 = vadd.f32 %v73, %v74
    %v76 = vadd.f32 %v66, %v36
    %v77 = vadd.f32 %v75, %v36
    %v78 = vmax.f32 %v76, 0.0
    %v79 = vmax.f32 %v77, 0.0
    %v80 = vlaneseq
    %v81 = vshrl.u32 %v80, 7
    %v82 = vsub.s32 0, %v81
    %v83 = vrot.slane %v78, %v82
    %v84 = vlaneseq
    %v85 = vshrl.u32 %v84, 7
    %v86 = vsub.s32 0, %v85
    %v87 = vrot.slane %v79, %v86
    %90 = vrot.lane.b32.xlu0 %v34, 124
    %v91 = vpop.permute.xlu0 %90
    %92 = vrot.lane.b32.xlu0 %v35, 124
    %v93 = vpop.permute.xlu0 %92
    %v96 = vmul.f32 %v83, %v91
    %v97 = vmul.f32 %v83, %v93
    %v98 = vmul.f32 %v87, %v91
    %v99 = vmul.f32 %v87, %v93
    %v100 = vsel %vm57, %v96, 0.0
    %101 = vadd.xlane.f32.xlu0 %v100
    %v102 = vpop.xlane.xlu0 %101
    %v103 = vsel %vm57, %v97, 0.0
    %104 = vadd.xlane.f32.xlu0 %v103
    %v105 = vpop.xlane.xlu0 %104
    %v106 = vsel %vm57, %v98, 0.0
    %107 = vadd.xlane.f32.xlu0 %v106
    %v108 = vpop.xlane.xlu0 %107
    %v109 = vsel %vm57, %v99, 0.0
    %110 = vadd.xlane.f32.xlu0 %v109
    %v111 = vpop.xlane.xlu0 %110
    %v112 = vadd.f32 %v102, %v34
    %v113 = vadd.f32 %v105, %v35
    %v114 = vadd.f32 %v108, %v34
    %v115 = vadd.f32 %v111, %v35
    %v116 = vsub.f32 0.0, %v112
    %v117 = vsub.f32 0.0, %v113
    %v118 = vsub.f32 0.0, %v114
    %v119 = vsub.f32 0.0, %v115
    %v120 = vmul.f32 %v116, 1.442695
    %v121 = vpow.pop %v120
    %v122 = vmul.f32 %v117, 1.442695
    %v123 = vpow.pop %v122
    %v124 = vmul.f32 %v118, 1.442695
    %v125 = vpow.pop %v124
    %v126 = vmul.f32 %v119, 1.442695
    %v127 = vpow.pop %v126
    %v128 = vadd.f32 %v121, 1.0
    %v129 = vadd.f32 %v123, 1.0
    %v130 = vadd.f32 %v125, 1.0
    %v131 = vadd.f32 %v127, 1.0
    %v132 = vrcp.pop %v128
    %v133 = vrcp.pop %v129
    %v134 = vrcp.pop %v130
    %v135 = vrcp.pop %v131
    %137 = vset.pattern.permute.xlu0 8
    %138 = vperm.xlu0 %137, %v132
    %v139 = vpop.permute.xlu0 %138
    %142 = vset.pattern.permute.xlu0 8
    %143 = vperm.xlu0 %142, %v133
    %v144 = vpop.permute.xlu0 %143
    %147 = vset.pattern.permute.xlu0 8
    %148 = vperm.xlu0 %147, %v134
    %v149 = vpop.permute.xlu0 %148
    %152 = vset.pattern.permute.xlu0 8
    %153 = vperm.xlu0 %152, %v135
    %v154 = vpop.permute.xlu0 %153
    %v156 = vmul.f32 %v26, %v139
    %v157 = vmul.f32 %v27, %v139
    %v158 = vmul.f32 %v28, %v144
    %v159 = vmul.f32 %v29, %v144
    %v160 = vmul.f32 %v30, %v149
    %v161 = vmul.f32 %v31, %v149
    %v162 = vmul.f32 %v32, %v154
    %v163 = vmul.f32 %v33, %v154
    %164 = vst [vmem:[#allocation5] sm:$0xff] %v156
    %165 = vst [vmem:[#allocation5 + $0x8] sm:$0xff] %v157
    %166 = vst [vmem:[#allocation5 + $0x10] sm:$0xff] %v158
    %167 = vst [vmem:[#allocation5 + $0x18] sm:$0xff] %v159
    %168 = vst [vmem:[#allocation5 + $0x20] sm:$0xff] %v160
    %169 = vst [vmem:[#allocation5 + $0x28] sm:$0xff] %v161
    %170 = vst [vmem:[#allocation5 + $0x30] sm:$0xff] %v162
    %171 = vst [vmem:[#allocation5 + $0x38] sm:$0xff] %v163
    // Predicated region
    $region14: #{tpu_custom_call.1} parent=1 // pred_check
      _
    $region15: #{tpu_custom_call.1} parent=1 // pred_check_branch
      %173 = sbr.rel (0) target = $region17
    $region16: #{tpu_custom_call.1} parent=1 // pred_region
      %s175 = ssub.s32 1024, 1024
      %176 = vsyncadd [#allocation4], %s175
      %s177 = sshll.u32 [#allocation5], 4
      %s178 = int_to_ptr.vmem [resolvable:$true] %s177
      %183 = dma.vmem_to_hbm [thread:$0]  %s178, 1024, %s2, [#allocation4], 256, 256, 16
    $region17: #{tpu_custom_call.1} parent=1 // pred_fallthru
      _
    // Predicated region
    $region18: #{tpu_custom_call.1} parent=1 // pred_check
      _
    $region19: #{tpu_custom_call.1} parent=1 // pred_check_branch
      %185 = sbr.rel (0) target = $region21
    $region20: #{tpu_custom_call.1} parent=1 // pred_region
      %186 = dma.done [#allocation4], 1024
    $region21: #{tpu_custom_call.1} parent=1 // pred_fallthru
      _
    %187 = vsyncpa [#allocation3], 1
    %188 = vsyncpa [#allocation4], 1

</llo_original>
